<compile_context>
chip_gen: v7x
topology: tpu7x:2x2x1
jax: 0.10.0
libtpu: 0.0.40
codegen_flags: <defaults>
</compile_context>

<pallas_src>
import functools

import jax
import jax.numpy as jnp
from jax import lax
from jax.experimental import pallas as pl
from jax.experimental.pallas import tpu as pltpu


# ---------------------------------------------------------------------------
# Pallas kernel: fused conv-as-matmul + bias (f32 accumulate, f32 bias add)
# ---------------------------------------------------------------------------
def _fused_conv_kernel(p_ref, w_ref, b_ref, o_ref):
    acc = jnp.dot(p_ref[...], w_ref[...], preferred_element_type=jnp.float32)
    o_ref[...] = (acc + b_ref[...]).astype(o_ref.dtype)


# ---------------------------------------------------------------------------
# Plain-JAX glue
# ---------------------------------------------------------------------------
def _round_up(x, m):
    return ((x + m - 1) // m) * m


def _im2col_nhwc(x_nhwc, k, stride, padding):
    """KxK patches -> [N*Ho*Wo, K*K*C], (kh, kw) outer, channel fastest."""
    N, H, W, C = x_nhwc.shape
    xp = jnp.pad(x_nhwc, ((0, 0), (padding, padding), (padding, padding), (0, 0)))
    Ho = (H + 2 * padding - k) // stride + 1
    Wo = (W + 2 * padding - k) // stride + 1
    cols = []
    for kh in range(k):
        for kw in range(k):
            cols.append(xp[:, kh:kh + stride * Ho:stride,
                           kw:kw + stride * Wo:stride, :])
    patches = jnp.concatenate(cols, axis=-1)              # [N, Ho, Wo, K*K*C]
    return patches.reshape(N * Ho * Wo, k * k * C), Ho, Wo


def _flatten_conv_weight(w_oihw):
    """[O, I, KH, KW] -> [KH*KW*I, O], matching _im2col_nhwc ordering."""
    O, I, KH, KW = w_oihw.shape
    return jnp.transpose(w_oihw, (2, 3, 1, 0)).reshape(KH * KW * I, O)


def _fold_projection(conv_w, proj_w):
    """Fold 1x1 projection into the following KxK conv (exact).

    conv_w: [O, P, KH, KW], proj_w: [P, I, 1, 1] -> [O, I, KH, KW]
    """
    return jnp.einsum("opkl,pi->oikl", conv_w, proj_w[:, :, 0, 0])


# ---------------------------------------------------------------------------
# Pallas call wrapper
# ---------------------------------------------------------------------------
def fused_conv_matmul(patches, w_flat, bias, out_dtype,
                      tm_max=1024, tn_max=512, vmem_budget=24 << 20):
    """patches [M, Kd] @ w_flat [Kd, Cout] + bias -> [M, Cout]."""
    M, Kd = patches.shape
    Cout = w_flat.shape[1]

    # Lane-dense output: pad Cout to a multiple of 128 (unmasked vst stores);
    # zero columns sliced off outside.
    Coutp = _round_up(Cout, 128)
    if Coutp != Cout:
        w_flat = jnp.pad(w_flat, ((0, 0), (0, Coutp - Cout)))
        bias = jnp.pad(bias, (0, Coutp - Cout))
    bias2d = bias.reshape(1, Coutp).astype(jnp.float32)

    tn = min(tn_max, Coutp)                                 # multiple of 128

    in_item = patches.dtype.itemsize
    w_item = w_flat.dtype.itemsize
    out_item = jnp.dtype(out_dtype).itemsize

    def footprint(tm):
        # double-buffered patch/output/weight/bias tiles
        return (2 * tm * Kd * in_item
                + 2 * tm * tn * out_item
                + 2 * Kd * tn * w_item
                + 2 * tn * 4)

    # Large M tile (multiple of 256) to amortize the ~600-cycle per-grid-step
    # pipeline overhead, shrunk until it fits the VMEM budget.
    tm = min(tm_max, _round_up(M, 256))
    while tm > 256 and footprint(tm) > vmem_budget:
        tm //= 2
    Mp = _round_up(M, tm)
    if Mp != M:
        patches = jnp.pad(patches, ((0, Mp - M), (0, 0)))

    vmem_limit = int(min(max(2 * footprint(tm), 32 << 20), 56 << 20))  # v7x-safe

    out = pl.pallas_call(
        _fused_conv_kernel,
        out_shape=jax.ShapeDtypeStruct((Mp, Coutp), out_dtype),
        grid_spec=pltpu.PrefetchScalarGridSpec(
            num_scalar_prefetch=0,
            grid=(Mp // tm, Coutp // tn),
            in_specs=[pl.BlockSpec((tm, Kd), lambda i, j: (i, 0)),
                      pl.BlockSpec((Kd, tn), lambda i, j: (0, j)),
                      pl.BlockSpec((1, tn), lambda i, j: (0, j))],
            out_specs=pl.BlockSpec((tm, tn), lambda i, j: (i, j))),
        compiler_params=pltpu.CompilerParams(
            dimension_semantics=("parallel", "parallel"),
            vmem_limit_bytes=vmem_limit),
    )(patches, w_flat, bias2d)
    return out[:M, :Cout]


# ---------------------------------------------------------------------------
# MVConv forward (exact, folded)
# ---------------------------------------------------------------------------
def mvconv_forward(x_nchw, params, *, kernel_size, stride, padding,
                   compute_dtype=jnp.float32):
    """x_nchw: [N, Cin, H, W] -> [N, Cout, Ho, Wo]."""
    N, Cin, H, W = x_nchw.shape
    out_dtype = x_nchw.dtype

    # Algebraic fold of both 1x1 projection branches (exact, == deploy()).
    w_eff = (params["main_conv_w"]
             + _fold_projection(params["left_conv_w"], params["left_projection"])
             + _fold_projection(params["right_conv_w"], params["right_projection"]))
    bias_sum = (params["main_conv_b"] + params["left_conv_b"]
                + params["right_conv_b"])

    # Cast before im2col so the K*K-expanded patch stream is already narrow.
    x_nhwc = jnp.transpose(x_nchw, (0, 2, 3, 1)).astype(compute_dtype)
    patches, Ho, Wo = _im2col_nhwc(x_nhwc, kernel_size, stride, padding)
    w_flat = _flatten_conv_weight(w_eff).astype(compute_dtype)

    out2d = fused_conv_matmul(patches, w_flat, bias_sum, out_dtype)
    Cout = w_eff.shape[0]
    out_nhwc = out2d.reshape(N, Ho, Wo, Cout)
    return jnp.transpose(out_nhwc, (0, 3, 1, 2))            # -> NCHW


# ---------------------------------------------------------------------------
# Reference (plain JAX, un-folded 3-branch form) for correctness checking
# ---------------------------------------------------------------------------
def _conv_ref(x_nchw, w_oihw, b, stride, padding):
    out = lax.conv_general_dilated(
        x_nchw, w_oihw, (stride, stride),
        [(padding, padding), (padding, padding)],
        dimension_numbers=("NCHW", "OIHW", "NCHW"))
    if b is not None:
        out = out + b[None, :, None, None]
    return out


def mvconv_reference(x_nchw, params, kernel_size, stride, padding):
    main = _conv_ref(x_nchw, params["main_conv_w"], params["main_conv_b"],
                     stride, padding)
    lproj = _conv_ref(x_nchw, params["left_projection"], None, 1, 0)
    rproj = _conv_ref(x_nchw, params["right_projection"], None, 1, 0)
    left = _conv_ref(lproj, params["left_conv_w"], params["left_conv_b"],
                     stride, padding)
    right = _conv_ref(rproj, params["right_conv_w"], params["right_conv_b"],
                      stride, padding)
    return main + left + right


# ---------------------------------------------------------------------------
# Main
# ---------------------------------------------------------------------------
if __name__ == "__main__":
    import numpy as np

    # Module config (small, consistent with MVConv.__init__)
    in_channels, out_channels = 4, 8
    kernel_size, stride, padding = 3, 1, 1
    projected_channels = max(8, in_channels // 3 + 1)        # = 8

    N, H, W = 2, 16, 16

    key = jax.random.PRNGKey(0)
    ks = jax.random.split(key, 9)
    params = {
        "left_projection": jax.random.normal(
            ks[0], (projected_channels, in_channels, 1, 1), jnp.float32) * 0.1,
        "right_projection": jax.random.normal(
            ks[1], (projected_channels, in_channels, 1, 1), jnp.float32) * 0.1,
        "main_conv_w": jax.random.normal(
            ks[2], (out_channels, in_channels, kernel_size, kernel_size),
            jnp.float32) * 0.1,
        "left_conv_w": jax.random.normal(
            ks[3], (out_channels, projected_channels, kernel_size, kernel_size),
            jnp.float32) * 0.1,
        "right_conv_w": jax.random.normal(
            ks[4], (out_channels, projected_channels, kernel_size, kernel_size),
            jnp.float32) * 0.1,
        "main_conv_b": jax.random.normal(ks[5], (out_channels,), jnp.float32) * 0.1,
        "left_conv_b": jax.random.normal(ks[6], (out_channels,), jnp.float32) * 0.1,
        "right_conv_b": jax.random.normal(ks[7], (out_channels,), jnp.float32) * 0.1,
    }

    x = jax.random.normal(ks[8], (N, in_channels, H, W), jnp.float32)

    ref = jax.block_until_ready(
        mvconv_reference(x, params, kernel_size, stride, padding))

    fwd = jax.jit(mvconv_forward,
                  static_argnames=("kernel_size", "stride", "padding",
                                   "compute_dtype"))

    # f32 operands: exact (within matmul reassociation) vs 3-branch reference.
    out_f32 = jax.block_until_ready(
        fwd(x, params, kernel_size=kernel_size, stride=stride, padding=padding,
            compute_dtype=jnp.float32))
    assert out_f32.shape == ref.shape, (out_f32.shape, ref.shape)
    np.testing.assert_allclose(np.asarray(out_f32), np.asarray(ref),
                               rtol=1e-3, atol=1e-3)

    # bf16 MXU operands (v6e/v5e fast path): f32 accumulation, looser tolerance.
    out_bf16 = jax.block_until_ready(
        fwd(x, params, kernel_size=kernel_size, stride=stride, padding=padding,
            compute_dtype=jnp.bfloat16))
    np.testing.assert_allclose(np.asarray(out_bf16), np.asarray(ref),
                               rtol=5e-2, atol=5e-2)

    print("KERNEL_OK")
</pallas_src>

<mosaic_0001>
module attributes {stable_mosaic.version = 11 : i64} {
  func.func @_fused_conv_kernel(%arg0: i32, %arg1: i32, %arg2: memref<512x36xf32, #tpu.memory_space<vmem>>, %arg3: memref<36x128xf32, #tpu.memory_space<vmem>>, %arg4: memref<1x128xf32, #tpu.memory_space<vmem>>, %arg5: memref<512x128xf32, #tpu.memory_space<vmem>>) attributes {dimension_semantics = [#tpu.dimension_semantics<parallel>, #tpu.dimension_semantics<parallel>], iteration_bounds = array<i64: 1, 1>, scalar_prefetch = 0 : i64, scratch_operands = 0 : i64, tpu.core_type = #tpu.core_type<tc>, window_params = [{transform_indices = @transform_0, window_bounds = array<i64: 512, 36>}, {transform_indices = @transform_1, window_bounds = array<i64: 36, 128>}, {transform_indices = @transform_2, window_bounds = array<i64: 1, 128>}, {transform_indices = @transform_3, window_bounds = array<i64: 512, 128>}]} {
    %c0 = arith.constant 0 : index
    %c0_0 = arith.constant 0 : index
    %0 = vector.load %arg2[%c0, %c0_0] : memref<512x36xf32, #tpu.memory_space<vmem>>, vector<512x36xf32>
    %c0_1 = arith.constant 0 : index
    %c0_2 = arith.constant 0 : index
    %1 = vector.load %arg3[%c0_1, %c0_2] : memref<36x128xf32, #tpu.memory_space<vmem>>, vector<36x128xf32>
    %cst = arith.constant dense<0.000000e+00> : vector<512x128xf32>
    %2 = tpu.matmul %0, %1, %cst {dimension_numbers = #tpu.dot_dimension_numbers<[1], [0], [0], [1], [0, 0, 1, 1], [], []>} : vector<512x36xf32>, vector<36x128xf32>, vector<512x128xf32> -> vector<512x128xf32>
    %c0_3 = arith.constant 0 : index
    %c0_4 = arith.constant 0 : index
    %3 = vector.load %arg4[%c0_3, %c0_4] : memref<1x128xf32, #tpu.memory_space<vmem>>, vector<1x128xf32>
    %4 = vector.broadcast %3 : vector<1x128xf32> to vector<512x128xf32>
    %5 = arith.addf %2, %4 : vector<512x128xf32>
    %c0_5 = arith.constant 0 : index
    %c0_6 = arith.constant 0 : index
    %6 = vector.load %arg5[%c0_5, %c0_6] : memref<512x128xf32, #tpu.memory_space<vmem>>, vector<512x128xf32>
    tpu.vector_store %arg5[%c0_5, %c0_6], %5 {strides = array<i32>} : memref<512x128xf32, #tpu.memory_space<vmem>>, vector<512x128xf32>,
    return
  }
  func.func @transform_0(%arg0: i32, %arg1: i32) -> (i32, i32) {
    %c0_i32 = arith.constant 0 : i32
    %c0_i32_0 = arith.constant 0 : i32
    return %arg0, %c0_i32 : i32, i32
  }
  func.func @transform_1(%arg0: i32, %arg1: i32) -> (i32, i32) {
    %c0_i32 = arith.constant 0 : i32
    %c0_i32_0 = arith.constant 0 : i32
    return %c0_i32, %arg1 : i32, i32
  }
  func.func @transform_2(%arg0: i32, %arg1: i32) -> (i32, i32) {
    %c0_i32 = arith.constant 0 : i32
    %c0_i32_0 = arith.constant 0 : i32
    return %c0_i32, %arg1 : i32, i32
  }
  func.func @transform_3(%arg0: i32, %arg1: i32) -> (i32, i32) {
    %c0_i32 = arith.constant 0 : i32
    return %arg0, %arg1 : i32, i32
  }
}

</mosaic_0001>

<llo_original>
// kernel: mvconv_forward.1
$region0: #{mvconv_forward.1}
  #allocation0 [shape = 'u32[]', space=smem, size = 0x4, offset = 0x4, fixed_abs, tag = 'smem constant byte address 0x4 - core index']
  #allocation1 [shape = 'u32[144,128]{1,0:T(1,128)}', space=vmem, size = 0x12000, scoped, tag = 'internal scratch']
  %s0 = inlined_call_operand.vmem [shape: f32[512,36], index: 0, kind: input, shape index: {}]
  %s1 = inlined_call_operand.vmem [shape: f32[36,128], index: 1, kind: input, shape index: {}]
  %s2 = inlined_call_operand.vmem [shape: f32[1,128], index: 2, kind: input, shape index: {}]
  %s3 = inlined_call_operand.vmem [shape: f32[512,128], index: 3, kind: output, shape index: {}]
  %s4 = sld [smem:[#allocation0]]
  $region22: #{mvconv_forward.1} parent=0
    _
  %s6 = ssub.s32 1, %s4
  %s7 = scalar_select 0, %s6, %s4
  // Predicated region
  $region2: #{mvconv_forward.1} parent=0 // pred_check
    _
  $region3: #{mvconv_forward.1} parent=0 // pred_check_branch
    %9 = sbr.rel (0) target = $region5
  $region4: #{mvconv_forward.1} parent=0 // pred_region
    _
  $region5: #{mvconv_forward.1} parent=0 // pred_fallthru
    _
  // Predicated region
  $region6: #{mvconv_forward.1} parent=0 // pred_check
    _
  $region7: #{mvconv_forward.1} parent=0 // pred_check_branch
    %11 = sbr.rel (0) target = $region9
  $region8: #{mvconv_forward.1} parent=0 // pred_region
    _
  $region9: #{mvconv_forward.1} parent=0 // pred_fallthru
    _
  // Predicated region
  $region10: #{mvconv_forward.1} parent=0 // pred_check
    _
  $region11: #{mvconv_forward.1} parent=0 // pred_check_branch
    %13 = sbr.rel (0) target = $region13
  $region12: #{mvconv_forward.1} parent=0 // pred_region
    _
  $region13: #{mvconv_forward.1} parent=0 // pred_fallthru
    _
  %v14 = vld [vmem:[%s0] sm:$0xff]
  %v15 = vld [vmem:[%s0 + $0x8] sm:$0xff]
  %v16 = vld [vmem:[%s0 + $0x10] sm:$0xff]
  %v17 = vld [vmem:[%s0 + $0x18] sm:$0xff]
  %v18 = vld [vmem:[%s0 + $0x20] sm:$0xff]
  %v19 = vld [vmem:[%s0 + $0x28] sm:$0xff]
  %v20 = vld [vmem:[%s0 + $0x30] sm:$0xff]
  %v21 = vld [vmem:[%s0 + $0x38] sm:$0xff]
  %v22 = vld [vmem:[%s0 + $0x40] sm:$0xff]
  %v23 = vld [vmem:[%s0 + $0x48] sm:$0xff]
  %v24 = vld [vmem:[%s0 + $0x50] sm:$0xff]
  %v25 = vld [vmem:[%s0 + $0x58] sm:$0xff]
  %v26 = vld [vmem:[%s0 + $0x60] sm:$0xff]
  %v27 = vld [vmem:[%s0 + $0x68] sm:$0xff]
  %v28 = vld [vmem:[%s0 + $0x70] sm:$0xff]
  %v29 = vld [vmem:[%s0 + $0x78] sm:$0xff]
  %v30 = vld [vmem:[%s0 + $0x80] sm:$0xff]
  %v31 = vld [vmem:[%s0 + $0x88] sm:$0xff]
  %v32 = vld [vmem:[%s0 + $0x90] sm:$0xff]
  %v33 = vld [vmem:[%s0 + $0x98] sm:$0xff]
  %v34 = vld [vmem:[%s0 + $0xa0] sm:$0xff]
  %v35 = vld [vmem:[%s0 + $0xa8] sm:$0xff]
  %v36 = vld [vmem:[%s0 + $0xb0] sm:$0xff]
  %v37 = vld [vmem:[%s0 + $0xb8] sm:$0xff]
  %v38 = vld [vmem:[%s0 + $0xc0] sm:$0xff]
  %v39 = vld [vmem:[%s0 + $0xc8] sm:$0xff]
  %v40 = vld [vmem:[%s0 + $0xd0] sm:$0xff]
  %v41 = vld [vmem:[%s0 + $0xd8] sm:$0xff]
  %v42 = vld [vmem:[%s0 + $0xe0] sm:$0xff]
  %v43 = vld [vmem:[%s0 + $0xe8] sm:$0xff]
  %v44 = vld [vmem:[%s0 + $0xf0] sm:$0xff]
  %v45 = vld [vmem:[%s0 + $0xf8] sm:$0xff]
  %v46 = vld [vmem:[%s0 + $0x100] sm:$0xff]
  %v47 = vld [vmem:[%s0 + $0x108] sm:$0xff]
  %v48 = vld [vmem:[%s0 + $0x110] sm:$0xff]
  %v49 = vld [vmem:[%s0 + $0x118] sm:$0xff]
  %v50 = vld [vmem:[%s0 + $0x120] sm:$0xff]
  %v51 = vld [vmem:[%s0 + $0x128] sm:$0xff]
  %v52 = vld [vmem:[%s0 + $0x130] sm:$0xff]
  %v53 = vld [vmem:[%s0 + $0x138] sm:$0xff]
  %v54 = vld [vmem:[%s0 + $0x140] sm:$0xff]
  %v55 = vld [vmem:[%s0 + $0x148] sm:$0xff]
  %v56 = vld [vmem:[%s0 + $0x150] sm:$0xff]
  %v57 = vld [vmem:[%s0 + $0x158] sm:$0xff]
  %v58 = vld [vmem:[%s0 + $0x160] sm:$0xff]
  %v59 = vld [vmem:[%s0 + $0x168] sm:$0xff]
  %v60 = vld [vmem:[%s0 + $0x170] sm:$0xff]
  %v61 = vld [vmem:[%s0 + $0x178] sm:$0xff]
  %v62 = vld [vmem:[%s0 + $0x180] sm:$0xff]
  %v63 = vld [vmem:[%s0 + $0x188] sm:$0xff]
  %v64 = vld [vmem:[%s0 + $0x190] sm:$0xff]
  %v65 = vld [vmem:[%s0 + $0x198] sm:$0xff]
  %v66 = vld [vmem:[%s0 + $0x1a0] sm:$0xff]
  %v67 = vld [vmem:[%s0 + $0x1a8] sm:$0xff]
  %v68 = vld [vmem:[%s0 + $0x1b0] sm:$0xff]
  %v69 = vld [vmem:[%s0 + $0x1b8] sm:$0xff]
  %v70 = vld [vmem:[%s0 + $0x1c0] sm:$0xff]
  %v71 = vld [vmem:[%s0 + $0x1c8] sm:$0xff]
  %v72 = vld [vmem:[%s0 + $0x1d0] sm:$0xff]
  %v73 = vld [vmem:[%s0 + $0x1d8] sm:$0xff]
  %v74 = vld [vmem:[%s0 + $0x1e0] sm:$0xff]
  %v75 = vld [vmem:[%s0 + $0x1e8] sm:$0xff]
  %v76 = vld [vmem:[%s0 + $0x1f0] sm:$0xff]
  %v77 = vld [vmem:[%s0 + $0x1f8] sm:$0xff]
  %v78 = vld [vmem:[%s1] sm:$0xff]
  %v79 = vld [vmem:[%s1 + $0x8] sm:$0xff]
  %v80 = vld [vmem:[%s1 + $0x10] sm:$0xff]
  %v81 = vld [vmem:[%s1 + $0x18] sm:$0xff]
  %v82 = vld [vmem:[%s1 + $0x20] sm:$0xf]
  %v83 = vld [vmem:[%s2] sm:$0x1]
  %v85 = vlaneseq
  %v86 = vshrl.u32 %v85, 7
  %v87 = vsub.s32 0, %v86
  %v88 = vrot.slane %v83, %v87
  %vm90 = vcmask 293888
  %v92 = vsel %vm90, %v14, 0
  %v95 = vsel %vm90, %v15, 0
  %v98 = vsel %vm90, %v16, 0
  %v101 = vsel %vm90, %v17, 0
  %v104 = vsel %vm90, %v18, 0
  %v107 = vsel %vm90, %v19, 0
  %v110 = vsel %vm90, %v20, 0
  %v113 = vsel %vm90, %v21, 0
  %v116 = vsel %vm90, %v22, 0
  %v119 = vsel %vm90, %v23, 0
  %v122 = vsel %vm90, %v24, 0
  %v125 = vsel %vm90, %v25, 0
  %v128 = vsel %vm90, %v26, 0
  %v131 = vsel %vm90, %v27, 0
  %v134 = vsel %vm90, %v28, 0
  %v137 = vsel %vm90, %v29, 0
  %v140 = vsel %vm90, %v30, 0
  %v143 = vsel %vm90, %v31, 0
  %v146 = vsel %vm90, %v32, 0
  %v149 = vsel %vm90, %v33, 0
  %v152 = vsel %vm90, %v34, 0
  %v155 = vsel %vm90, %v35, 0
  %v158 = vsel %vm90, %v36, 0
  %v161 = vsel %vm90, %v37, 0
  %v164 = vsel %vm90, %v38, 0
  %v167 = vsel %vm90, %v39, 0
  %v170 = vsel %vm90, %v40, 0
  %v173 = vsel %vm90, %v41, 0
  %v176 = vsel %vm90, %v42, 0
  %v179 = vsel %vm90, %v43, 0
  %v182 = vsel %vm90, %v44, 0
  %v185 = vsel %vm90, %v45, 0
  %v188 = vsel %vm90, %v46, 0
  %v191 = vsel %vm90, %v47, 0
  %v194 = vsel %vm90, %v48, 0
  %v197 = vsel %vm90, %v49, 0
  %v200 = vsel %vm90, %v50, 0
  %v203 = vsel %vm90, %v51, 0
  %v206 = vsel %vm90, %v52, 0
  %v209 = vsel %vm90, %v53, 0
  %v212 = vsel %vm90, %v54, 0
  %v215 = vsel %vm90, %v55, 0
  %v218 = vsel %vm90, %v56, 0
  %v221 = vsel %vm90, %v57, 0
  %v224 = vsel %vm90, %v58, 0
  %v227 = vsel %vm90, %v59, 0
  %v230 = vsel %vm90, %v60, 0
  %v233 = vsel %vm90, %v61, 0
  %v236 = vsel %vm90, %v62, 0
  %v239 = vsel %vm90, %v63, 0
  %v242 = vsel %vm90, %v64, 0
  %v245 = vsel %vm90, %v65, 0
  %v248 = vsel %vm90, %v66, 0
  %v251 = vsel %vm90, %v67, 0
  %v254 = vsel %vm90, %v68, 0
  %v257 = vsel %vm90, %v69, 0
  %v260 = vsel %vm90, %v70, 0
  %v263 = vsel %vm90, %v71, 0
  %v266 = vsel %vm90, %v72, 0
  %v269 = vsel %vm90, %v73, 0
  %v272 = vsel %vm90, %v74, 0
  %v275 = vsel %vm90, %v75, 0
  %v278 = vsel %vm90, %v76, 0
  %v281 = vsel %vm90, %v77, 0
  %vm283 = vcmask 1043456
  %v285 = vsel %vm283, %v82, 0
  %287 = vmatprep.subr.mxu0 0.0
  %288 = vmatpush1.msra.mxu0 %v78
  %289 = vmatprep.subr.mxu0 0.0
  %290 = vmatpush1.msra.mxu0 %v79
  %291 = vmatprep.subr.mxu0 0.0
  %292 = vmatpush1.msra.mxu0 %v80
  %293 = vmatprep.subr.mxu0 0.0
  %294 = vmatpush1.msra.mxu0 %v81
  %295 = vmatprep.subr.mxu0 0.0
  %296 = vmatpush1.msra.mxu0 %v285
  %297 = vmatprep.subr.mxu0 0.0
  %298 = vmatpush1.msra.mxu0 0.0
  %299 = vmatprep.subr.mxu0 0.0
  %300 = vmatpush1.msra.mxu0 0.0
  %301 = vmatprep.subr.mxu0 0.0
  %302 = vmatpush1.msra.mxu0 0.0
  %303 = vmatprep.subr.mxu0 0.0
  %304 = vmatpush1.msra.mxu0 0.0
  %305 = vmatprep.subr.mxu0 0.0
  %306 = vmatpush1.msra.mxu0 0.0
  %307 = vmatprep.subr.mxu0 0.0
  %308 = vmatpush1.msra.mxu0 0.0
  %309 = vmatprep.subr.mxu0 0.0
  %310 = vmatpush1.msra.mxu0 0.0
  %311 = vmatprep.subr.mxu0 0.0
  %312 = vmatpush1.msra.mxu0 0.0
  %313 = vmatprep.subr.mxu0 0.0
  %314 = vmatpush1.msra.mxu0 0.0
  %315 = vmatprep.subr.mxu0 0.0
  %316 = vmatpush1.msra.mxu0 0.0
  %317 = vmatprep.subr.mxu0 0.0
  %318 = vmatpush1.msra.mxu0 0.0
  %319 = vmatprep.subr.mxu0 0.0
  %320 = vmatpush1.msra.mxu0 0.0
  %321 = vmatprep.subr.mxu0 0.0
  %322 = vmatpush1.msra.mxu0 0.0
  %323 = vmatprep.subr.mxu0 0.0
  %324 = vmatpush1.msra.mxu0 0.0
  %325 = vmatprep.subr.mxu0 0.0
  %326 = vmatpush1.msra.mxu0 0.0
  %327 = vmatprep.subr.mxu0 0.0
  %328 = vmatpush1.msra.mxu0 0.0
  %329 = vmatprep.subr.mxu0 0.0
  %330 = vmatpush1.msra.mxu0 0.0
  %331 = vmatprep.subr.mxu0 0.0
  %332 = vmatpush1.msra.mxu0 0.0
  %333 = vmatprep.subr.mxu0 0.0
  %334 = vmatpush1.msra.mxu0 0.0
  %335 = vmatprep.subr.mxu0 0.0
  %336 = vmatpush1.msra.mxu0 0.0
  %337 = vmatprep.subr.mxu0 0.0
  %338 = vmatpush1.msra.mxu0 0.0
  %339 = vmatprep.subr.mxu0 0.0
  %340 = vmatpush1.msra.mxu0 0.0
  %341 = vmatprep.subr.mxu0 0.0
  %342 = vmatpush1.msra.mxu0 0.0
  %343 = vmatprep.subr.mxu0 0.0
  %344 = vmatpush1.msra.mxu0 0.0
  %345 = vmatprep.subr.mxu0 0.0
  %346 = vmatpush1.msra.mxu0 0.0
  %347 = vmatprep.subr.mxu0 0.0
  %348 = vmatpush1.msra.mxu0 0.0
  %349 = vmatprep.subr.mxu0 0.0
  %350 = vmatpush1.msra.mxu0 0.0
  %351 = vmatprep.mubr.f32.mxu0 0.0
  %352 = vmatmul.mubr.f32.gmra.mrb[0].mxu0 %v92
  %v353 = vpop.f32.mrb[0].mxu0
  %v354 = vadd.f32 %v88, %v353
  %v355 = vpop.f32.mrb[0].mxu0
  %356 = vmatprep.mubr.f32.mxu0 0.0
  %357 = vmatmul.mubr.f32.gmra.mrb[0].mxu0 %v95
  %v358 = vpop.f32.mrb[0].mxu0
  %v359 = vadd.f32 %v88, %v358
  %v360 = vpop.f32.mrb[0].mxu0
  %361 = vmatprep.mubr.f32.mxu0 0.0
  %362 = vmatmul.mubr.f32.gmra.mrb[0].mxu0 %v98
  %v363 = vpop.f32.mrb[0].mxu0
  %v364 = vadd.f32 %v88, %v363
  %v365 = vpop.f32.mrb[0].mxu0
  %366 = vmatprep.mubr.f32.mxu0 0.0
  %367 = vmatmul.mubr.f32.gmra.mrb[0].mxu0 %v101
  %v368 = vpop.f32.mrb[0].mxu0
  %v369 = vadd.f32 %v88, %v368
  %v370 = vpop.f32.mrb[0].mxu0
  %371 = vmatprep.mubr.f32.mxu0 0.0
  %372 = vmatmul.mubr.f32.gmra.mrb[0].mxu0 %v104
  %v373 = vpop.f32.mrb[0].mxu0
  %v374 = vadd.f32 %v88, %v373
  %v375 = vpop.f32.mrb[0].mxu0
  %376 = vmatprep.mubr.f32.mxu0 0.0
  %377 = vmatmul.mubr.f32.gmra.mrb[0].mxu0 %v107
  %v378 = vpop.f32.mrb[0].mxu0
  %v379 = vadd.f32 %v88, %v378
  %v380 = vpop.f32.mrb[0].mxu0
  %381 = vmatprep.mubr.f32.mxu0 0.0
  %382 = vmatmul.mubr.f32.gmra.mrb[0].mxu0 %v110
  %v383 = vpop.f32.mrb[0].mxu0
  %v384 = vadd.f32 %v88, %v383
  %v385 = vpop.f32.mrb[0].mxu0
  %386 = vmatprep.mubr.f32.mxu0 0.0
  %387 = vmatmul.mubr.f32.gmra.mrb[0].mxu0 %v113
  %v388 = vpop.f32.mrb[0].mxu0
  %v389 = vadd.f32 %v88, %v388
  %v390 = vpop.f32.mrb[0].mxu0
  %391 = vmatprep.mubr.f32.mxu0 0.0
  %392 = vmatmul.mubr.f32.gmra.mrb[0].mxu0 %v116
  %v393 = vpop.f32.mrb[0].mxu0
  %v394 = vadd.f32 %v88, %v393
  %v395 = vpop.f32.mrb[0].mxu0
  %396 = vmatprep.mubr.f32.mxu0 0.0
  %397 = vmatmul.mubr.f32.gmra.mrb[0].mxu0 %v119
  %v398 = vpop.f32.mrb[0].mxu0
  %v399 = vadd.f32 %v88, %v398
  %v400 = vpop.f32.mrb[0].mxu0
  %401 = vmatprep.mubr.f32.mxu0 0.0
  %402 = vmatmul.mubr.f32.gmra.mrb[0].mxu0 %v122
  %v403 = vpop.f32.mrb[0].mxu0
  %v404 = vadd.f32 %v88, %v403
  %v405 = vpop.f32.mrb[0].mxu0
  %406 = vmatprep.mubr.f32.mxu0 0.0
  %407 = vmatmul.mubr.f32.gmra.mrb[0].mxu0 %v125
  %v408 = vpop.f32.mrb[0].mxu0
  %v409 = vadd.f32 %v88, %v408
  %v410 = vpop.f32.mrb[0].mxu0
  %411 = vmatprep.mubr.f32.mxu0 0.0
  %412 = vmatmul.mubr.f32.gmra.mrb[0].mxu0 %v128
  %v413 = vpop.f32.mrb[0].mxu0
  %v414 = vadd.f32 %v88, %v413
  %v415 = vpop.f32.mrb[0].mxu0
  %416 = vmatprep.mubr.f32.mxu0 0.0
  %417 = vmatmul.mubr.f32.gmra.mrb[0].mxu0 %v131
  %v418 = vpop.f32.mrb[0].mxu0
  %v419 = vadd.f32 %v88, %v418
  %v420 = vpop.f32.mrb[0].mxu0
  %421 = vmatprep.mubr.f32.mxu0 0.0
  %422 = vmatmul.mubr.f32.gmra.mrb[0].mxu0 %v134
  %v423 = vpop.f32.mrb[0].mxu0
  %v424 = vadd.f32 %v88, %v423
  %v425 = vpop.f32.mrb[0].mxu0
  %426 = vmatprep.mubr.f32.mxu0 0.0
  %427 = vmatmul.mubr.f32.gmra.mrb[0].mxu0 %v137
  %v428 = vpop.f32.mrb[0].mxu0
  %v429 = vadd.f32 %v88, %v428
  %v430 = vpop.f32.mrb[0].mxu0
  %431 = vmatprep.mubr.f32.mxu0 0.0
  %432 = vmatmul.mubr.f32.gmra.mrb[0].mxu0 %v140
  %v433 = vpop.f32.mrb[0].mxu0
  %v434 = vadd.f32 %v88, %v433
  %v435 = vpop.f32.mrb[0].mxu0
  %436 = vmatprep.mubr.f32.mxu0 0.0
  %437 = vmatmul.mubr.f32.gmra.mrb[0].mxu0 %v143
  %v438 = vpop.f32.mrb[0].mxu0
  %v439 = vadd.f32 %v88, %v438
  %v440 = vpop.f32.mrb[0].mxu0
  %441 = vmatprep.mubr.f32.mxu0 0.0
  %442 = vmatmul.mubr.f32.gmra.mrb[0].mxu0 %v146
  %v443 = vpop.f32.mrb[0].mxu0
  %v444 = vadd.f32 %v88, %v443
  %v445 = vpop.f32.mrb[0].mxu0
  %446 = vmatprep.mubr.f32.mxu0 0.0
  %447 = vmatmul.mubr.f32.gmra.mrb[0].mxu0 %v149
  %v448 = vpop.f32.mrb[0].mxu0
  %v449 = vadd.f32 %v88, %v448
  %v450 = vpop.f32.mrb[0].mxu0
  %451 = vmatprep.mubr.f32.mxu0 0.0
  %452 = vmatmul.mubr.f32.gmra.mrb[0].mxu0 %v152
  %v453 = vpop.f32.mrb[0].mxu0
  %v454 = vadd.f32 %v88, %v453
  %v455 = vpop.f32.mrb[0].mxu0
  %456 = vmatprep.mubr.f32.mxu0 0.0
  %457 = vmatmul.mubr.f32.gmra.mrb[0].mxu0 %v155
  %v458 = vpop.f32.mrb[0].mxu0
  %v459 = vadd.f32 %v88, %v458
  %v460 = vpop.f32.mrb[0].mxu0
  %461 = vmatprep.mubr.f32.mxu0 0.0
  %462 = vmatmul.mubr.f32.gmra.mrb[0].mxu0 %v158
  %v463 = vpop.f32.mrb[0].mxu0
  %v464 = vadd.f32 %v88, %v463
  %v465 = vpop.f32.mrb[0].mxu0
  %466 = vmatprep.mubr.f32.mxu0 0.0
  %467 = vmatmul.mubr.f32.gmra.mrb[0].mxu0 %v161
  %v468 = vpop.f32.mrb[0].mxu0
  %v469 = vadd.f32 %v88, %v468
  %v470 = vpop.f32.mrb[0].mxu0
  %471 = vmatprep.mubr.f32.mxu0 0.0
  %472 = vmatmul.mubr.f32.gmra.mrb[0].mxu0 %v164
  %v473 = vpop.f32.mrb[0].mxu0
  %v474 = vadd.f32 %v88, %v473
  %v475 = vpop.f32.mrb[0].mxu0
  %476 = vmatprep.mubr.f32.mxu0 0.0
  %477 = vmatmul.mubr.f32.gmra.mrb[0].mxu0 %v167
  %v478 = vpop.f32.mrb[0].mxu0
  %v479 = vadd.f32 %v88, %v478
  %v480 = vpop.f32.mrb[0].mxu0
  %481 = vmatprep.mubr.f32.mxu0 0.0
  %482 = vmatmul.mubr.f32.gmra.mrb[0].mxu0 %v170
  %v483 = vpop.f32.mrb[0].mxu0
  %v484 = vadd.f32 %v88, %v483
  %v485 = vpop.f32.mrb[0].mxu0
  %486 = vmatprep.mubr.f32.mxu0 0.0
  %487 = vmatmul.mubr.f32.gmra.mrb[0].mxu0 %v173
  %v488 = vpop.f32.mrb[0].mxu0
  %v489 = vadd.f32 %v88, %v488
  %v490 = vpop.f32.mrb[0].mxu0
  %491 = vmatprep.mubr.f32.mxu0 0.0
  %492 = vmatmul.mubr.f32.gmra.mrb[0].mxu0 %v176
  %v493 = vpop.f32.mrb[0].mxu0
  %v494 = vadd.f32 %v88, %v493
  %v495 = vpop.f32.mrb[0].mxu0
  %496 = vmatprep.mubr.f32.mxu0 0.0
  %497 = vmatmul.mubr.f32.gmra.mrb[0].mxu0 %v179
  %v498 = vpop.f32.mrb[0].mxu0
  %v499 = vadd.f32 %v88, %v498
  %v500 = vpop.f32.mrb[0].mxu0
  %501 = vmatprep.mubr.f32.mxu0 0.0
  %502 = vmatmul.mubr.f32.gmra.mrb[0].mxu0 %v182
  %v503 = vpop.f32.mrb[0].mxu0
  %v504 = vadd.f32 %v88, %v503
  %v505 = vpop.f32.mrb[0].mxu0
  %506 = vmatprep.mubr.f32.mxu0 0.0
  %507 = vmatmul.mubr.f32.gmra.mrb[0].mxu0 %v185
  %v508 = vpop.f32.mrb[0].mxu0
  %v509 = vadd.f32 %v88, %v508
  %v510 = vpop.f32.mrb[0].mxu0
  %511 = vmatprep.mubr.f32.mxu0 0.0
  %512 = vmatmul.mubr.f32.gmra.mrb[0].mxu0 %v188
  %v513 = vpop.f32.mrb[0].mxu0
  %v514 = vadd.f32 %v88, %v513
  %v515 = vpop.f32.mrb[0].mxu0
  %516 = vmatprep.mubr.f32.mxu0 0.0
  %517 = vmatmul.mubr.f32.gmra.mrb[0].mxu0 %v191
  %v518 = vpop.f32.mrb[0].mxu0
  %v519 = vadd.f32 %v88, %v518
  %v520 = vpop.f32.mrb[0].mxu0
  %521 = vmatprep.mubr.f32.mxu0 0.0
  %522 = vmatmul.mubr.f32.gmra.mrb[0].mxu0 %v194
  %v523 = vpop.f32.mrb[0].mxu0
  %v524 = vadd.f32 %v88, %v523
  %v525 = vpop.f32.mrb[0].mxu0
  %526 = vmatprep.mubr.f32.mxu0 0.0
  %527 = vmatmul.mubr.f32.gmra.mrb[0].mxu0 %v197
  %v528 = vpop.f32.mrb[0].mxu0
  %v529 = vadd.f32 %v88, %v528
  %v530 = vpop.f32.mrb[0].mxu0
  %531 = vmatprep.mubr.f32.mxu0 0.0
  %532 = vmatmul.mubr.f32.gmra.mrb[0].mxu0 %v200
  %v533 = vpop.f32.mrb[0].mxu0
  %v534 = vadd.f32 %v88, %v533
  %v535 = vpop.f32.mrb[0].mxu0
  %536 = vmatprep.mubr.f32.mxu0 0.0
  %537 = vmatmul.mubr.f32.gmra.mrb[0].mxu0 %v203
  %v538 = vpop.f32.mrb[0].mxu0
  %v539 = vadd.f32 %v88, %v538
  %v540 = vpop.f32.mrb[0].mxu0
  %541 = vmatprep.mubr.f32.mxu0 0.0
  %542 = vmatmul.mubr.f32.gmra.mrb[0].mxu0 %v206
  %v543 = vpop.f32.mrb[0].mxu0
  %v544 = vadd.f32 %v88, %v543
  %v545 = vpop.f32.mrb[0].mxu0
  %546 = vmatprep.mubr.f32.mxu0 0.0
  %547 = vmatmul.mubr.f32.gmra.mrb[0].mxu0 %v209
  %v548 = vpop.f32.mrb[0].mxu0
  %v549 = vadd.f32 %v88, %v548
  %v550 = vpop.f32.mrb[0].mxu0
  %551 = vmatprep.mubr.f32.mxu0 0.0
  %552 = vmatmul.mubr.f32.gmra.mrb[0].mxu0 %v212
  %v553 = vpop.f32.mrb[0].mxu0
  %v554 = vadd.f32 %v88, %v553
  %v555 = vpop.f32.mrb[0].mxu0
  %556 = vmatprep.mubr.f32.mxu0 0.0
  %557 = vmatmul.mubr.f32.gmra.mrb[0].mxu0 %v215
  %v558 = vpop.f32.mrb[0].mxu0
  %v559 = vadd.f32 %v88, %v558
  %v560 = vpop.f32.mrb[0].mxu0
  %561 = vmatprep.mubr.f32.mxu0 0.0
  %562 = vmatmul.mubr.f32.gmra.mrb[0].mxu0 %v218
  %v563 = vpop.f32.mrb[0].mxu0
  %v564 = vadd.f32 %v88, %v563
  %v565 = vpop.f32.mrb[0].mxu0
  %566 = vmatprep.mubr.f32.mxu0 0.0
  %567 = vmatmul.mubr.f32.gmra.mrb[0].mxu0 %v221
  %v568 = vpop.f32.mrb[0].mxu0
  %v569 = vadd.f32 %v88, %v568
  %v570 = vpop.f32.mrb[0].mxu0
  %571 = vmatprep.mubr.f32.mxu0 0.0
  %572 = vmatmul.mubr.f32.gmra.mrb[0].mxu0 %v224
  %v573 = vpop.f32.mrb[0].mxu0
  %v574 = vadd.f32 %v88, %v573
  %v575 = vpop.f32.mrb[0].mxu0
  %576 = vmatprep.mubr.f32.mxu0 0.0
  %577 = vmatmul.mubr.f32.gmra.mrb[0].mxu0 %v227
  %v578 = vpop.f32.mrb[0].mxu0
  %v579 = vadd.f32 %v88, %v578
  %v580 = vpop.f32.mrb[0].mxu0
  %581 = vmatprep.mubr.f32.mxu0 0.0
  %582 = vmatmul.mubr.f32.gmra.mrb[0].mxu0 %v230
  %v583 = vpop.f32.mrb[0].mxu0
  %v584 = vadd.f32 %v88, %v583
  %v585 = vpop.f32.mrb[0].mxu0
  %586 = vmatprep.mubr.f32.mxu0 0.0
  %587 = vmatmul.mubr.f32.gmra.mrb[0].mxu0 %v233
  %v588 = vpop.f32.mrb[0].mxu0
  %v589 = vadd.f32 %v88, %v588
  %v590 = vpop.f32.mrb[0].mxu0
  %591 = vmatprep.mubr.f32.mxu0 0.0
  %592 = vmatmul.mubr.f32.gmra.mrb[0].mxu0 %v236
  %v593 = vpop.f32.mrb[0].mxu0
  %v594 = vadd.f32 %v88, %v593
  %v595 = vpop.f32.mrb[0].mxu0
  %596 = vmatprep.mubr.f32.mxu0 0.0
  %597 = vmatmul.mubr.f32.gmra.mrb[0].mxu0 %v239
  %v598 = vpop.f32.mrb[0].mxu0
  %v599 = vadd.f32 %v88, %v598
  %v600 = vpop.f32.mrb[0].mxu0
  %601 = vmatprep.mubr.f32.mxu0 0.0
  %602 = vmatmul.mubr.f32.gmra.mrb[0].mxu0 %v242
  %v603 = vpop.f32.mrb[0].mxu0
  %v604 = vadd.f32 %v88, %v603
  %v605 = vpop.f32.mrb[0].mxu0
  %606 = vmatprep.mubr.f32.mxu0 0.0
  %607 = vmatmul.mubr.f32.gmra.mrb[0].mxu0 %v245
  %v608 = vpop.f32.mrb[0].mxu0
  %v609 = vadd.f32 %v88, %v608
  %v610 = vpop.f32.mrb[0].mxu0
  %611 = vmatprep.mubr.f32.mxu0 0.0
  %612 = vmatmul.mubr.f32.gmra.mrb[0].mxu0 %v248
  %v613 = vpop.f32.mrb[0].mxu0
  %v614 = vadd.f32 %v88, %v613
  %v615 = vpop.f32.mrb[0].mxu0
  %616 = vmatprep.mubr.f32.mxu0 0.0
  %617 = vmatmul.mubr.f32.gmra.mrb[0].mxu0 %v251
  %v618 = vpop.f32.mrb[0].mxu0
  %v619 = vadd.f32 %v88, %v618
  %v620 = vpop.f32.mrb[0].mxu0
  %621 = vmatprep.mubr.f32.mxu0 0.0
  %622 = vmatmul.mubr.f32.gmra.mrb[0].mxu0 %v254
  %v623 = vpop.f32.mrb[0].mxu0
  %v624 = vadd.f32 %v88, %v623
  %v625 = vpop.f32.mrb[0].mxu0
  %626 = vmatprep.mubr.f32.mxu0 0.0
  %627 = vmatmul.mubr.f32.gmra.mrb[0].mxu0 %v257
  %v628 = vpop.f32.mrb[0].mxu0
  %v629 = vadd.f32 %v88, %v628
  %v630 = vpop.f32.mrb[0].mxu0
  %631 = vmatprep.mubr.f32.mxu0 0.0
  %632 = vmatmul.mubr.f32.gmra.mrb[0].mxu0 %v260
  %v633 = vpop.f32.mrb[0].mxu0
  %v634 = vadd.f32 %v88, %v633
  %v635 = vpop.f32.mrb[0].mxu0
  %636 = vmatprep.mubr.f32.mxu0 0.0
  %637 = vmatmul.mubr.f32.gmra.mrb[0].mxu0 %v263
  %v638 = vpop.f32.mrb[0].mxu0
  %v639 = vadd.f32 %v88, %v638
  %v640 = vpop.f32.mrb[0].mxu0
  %641 = vmatprep.mubr.f32.mxu0 0.0
  %642 = vmatmul.mubr.f32.gmra.mrb[0].mxu0 %v266
  %v643 = vpop.f32.mrb[0].mxu0
  %v644 = vadd.f32 %v88, %v643
  %v645 = vpop.f32.mrb[0].mxu0
  %646 = vmatprep.mubr.f32.mxu0 0.0
  %647 = vmatmul.mubr.f32.gmra.mrb[0].mxu0 %v269
  %v648 = vpop.f32.mrb[0].mxu0
  %v649 = vadd.f32 %v88, %v648
  %v650 = vpop.f32.mrb[0].mxu0
  %651 = vmatprep.mubr.f32.mxu0 0.0
  %652 = vmatmul.mubr.f32.gmra.mrb[0].mxu0 %v272
  %v653 = vpop.f32.mrb[0].mxu0
  %v654 = vadd.f32 %v88, %v653
  %v655 = vpop.f32.mrb[0].mxu0
  %656 = vmatprep.mubr.f32.mxu0 0.0
  %657 = vmatmul.mubr.f32.gmra.mrb[0].mxu0 %v275
  %v658 = vpop.f32.mrb[0].mxu0
  %v659 = vadd.f32 %v88, %v658
  %v660 = vpop.f32.mrb[0].mxu0
  %661 = vmatprep.mubr.f32.mxu0 0.0
  %662 = vmatmul.mubr.f32.gmra.mrb[0].mxu0 %v278
  %v663 = vpop.f32.mrb[0].mxu0
  %v664 = vadd.f32 %v88, %v663
  %v665 = vpop.f32.mrb[0].mxu0
  %666 = vmatprep.mubr.f32.mxu0 0.0
  %667 = vmatmul.mubr.f32.gmra.mrb[0].mxu0 %v281
  %v668 = vpop.f32.mrb[0].mxu0
  %v669 = vadd.f32 %v88, %v668
  %v670 = vpop.f32.mrb[0].mxu0
  %671 = vdwg.mxu0
  %672 = vst [vmem:[%s3] sm:$0xff] %v354
  %673 = vst [vmem:[%s3 + $0x8] sm:$0xff] %v359
  %674 = vst [vmem:[%s3 + $0x10] sm:$0xff] %v364
  %675 = vst [vmem:[%s3 + $0x18] sm:$0xff] %v369
  %676 = vst [vmem:[%s3 + $0x20] sm:$0xff] %v374
  %677 = vst [vmem:[%s3 + $0x28] sm:$0xff] %v379
  %678 = vst [vmem:[%s3 + $0x30] sm:$0xff] %v384
  %679 = vst [vmem:[%s3 + $0x38] sm:$0xff] %v389
  %680 = vst [vmem:[%s3 + $0x40] sm:$0xff] %v394
  %681 = vst [vmem:[%s3 + $0x48] sm:$0xff] %v399
  %682 = vst [vmem:[%s3 + $0x50] sm:$0xff] %v404
  %683 = vst [vmem:[%s3 + $0x58] sm:$0xff] %v409
  %684 = vst [vmem:[%s3 + $0x60] sm:$0xff] %v414
  %685 = vst [vmem:[%s3 + $0x68] sm:$0xff] %v419
  %686 = vst [vmem:[%s3 + $0x70] sm:$0xff] %v424
  %687 = vst [vmem:[%s3 + $0x78] sm:$0xff] %v429
  %688 = vst [vmem:[%s3 + $0x80] sm:$0xff] %v434
  %689 = vst [vmem:[%s3 + $0x88] sm:$0xff] %v439
  %690 = vst [vmem:[%s3 + $0x90] sm:$0xff] %v444
  %691 = vst [vmem:[%s3 + $0x98] sm:$0xff] %v449
  %692 = vst [vmem:[%s3 + $0xa0] sm:$0xff] %v454
  %693 = vst [vmem:[%s3 + $0xa8] sm:$0xff] %v459
  %694 = vst [vmem:[%s3 + $0xb0] sm:$0xff] %v464
  %695 = vst [vmem:[%s3 + $0xb8] sm:$0xff] %v469
  %696 = vst [vmem:[%s3 + $0xc0] sm:$0xff] %v474
  %697 = vst [vmem:[%s3 + $0xc8] sm:$0xff] %v479
  %698 = vst [vmem:[%s3 + $0xd0] sm:$0xff] %v484
  %699 = vst [vmem:[%s3 + $0xd8] sm:$0xff] %v489
  %700 = vst [vmem:[%s3 + $0xe0] sm:$0xff] %v494
  %701 = vst [vmem:[%s3 + $0xe8] sm:$0xff] %v499
  %702 = vst [vmem:[%s3 + $0xf0] sm:$0xff] %v504
  %703 = vst [vmem:[%s3 + $0xf8] sm:$0xff] %v509
  %704 = vst [vmem:[%s3 + $0x100] sm:$0xff] %v514
  %705 = vst [vmem:[%s3 + $0x108] sm:$0xff] %v519
  %706 = vst [vmem:[%s3 + $0x110] sm:$0xff] %v524
  %707 = vst [vmem:[%s3 + $0x118] sm:$0xff] %v529
  %708 = vst [vmem:[%s3 + $0x120] sm:$0xff] %v534
  %709 = vst [vmem:[%s3 + $0x128] sm:$0xff] %v539
  %710 = vst [vmem:[%s3 + $0x130] sm:$0xff] %v544
  %711 = vst [vmem:[%s3 + $0x138] sm:$0xff] %v549
  %712 = vst [vmem:[%s3 + $0x140] sm:$0xff] %v554
  %713 = vst [vmem:[%s3 + $0x148] sm:$0xff] %v559
  %714 = vst [vmem:[%s3 + $0x150] sm:$0xff] %v564
  %715 = vst [vmem:[%s3 + $0x158] sm:$0xff] %v569
  %716 = vst [vmem:[%s3 + $0x160] sm:$0xff] %v574
  %717 = vst [vmem:[%s3 + $0x168] sm:$0xff] %v579
  %718 = vst [vmem:[%s3 + $0x170] sm:$0xff] %v584
  %719 = vst [vmem:[%s3 + $0x178] sm:$0xff] %v589
  %720 = vst [vmem:[%s3 + $0x180] sm:$0xff] %v594
  %721 = vst [vmem:[%s3 + $0x188] sm:$0xff] %v599
  %722 = vst [vmem:[%s3 + $0x190] sm:$0xff] %v604
  %723 = vst [vmem:[%s3 + $0x198] sm:$0xff] %v609
  %724 = vst [vmem:[%s3 + $0x1a0] sm:$0xff] %v614
  %725 = vst [vmem:[%s3 + $0x1a8] sm:$0xff] %v619
  %726 = vst [vmem:[%s3 + $0x1b0] sm:$0xff] %v624
  %727 = vst [vmem:[%s3 + $0x1b8] sm:$0xff] %v629
  %728 = vst [vmem:[%s3 + $0x1c0] sm:$0xff] %v634
  %729 = vst [vmem:[%s3 + $0x1c8] sm:$0xff] %v639
  %730 = vst [vmem:[%s3 + $0x1d0] sm:$0xff] %v644
  %731 = vst [vmem:[%s3 + $0x1d8] sm:$0xff] %v649
  %732 = vst [vmem:[%s3 + $0x1e0] sm:$0xff] %v654
  %733 = vst [vmem:[%s3 + $0x1e8] sm:$0xff] %v659
  %734 = vst [vmem:[%s3 + $0x1f0] sm:$0xff] %v664
  %735 = vst [vmem:[%s3 + $0x1f8] sm:$0xff] %v669
  // Predicated region
  $region14: #{mvconv_forward.1} parent=0 // pred_check
    _
  $region15: #{mvconv_forward.1} parent=0 // pred_check_branch
    %737 = sbr.rel (0) target = $region17
  $region16: #{mvconv_forward.1} parent=0 // pred_region
    _
  $region17: #{mvconv_forward.1} parent=0 // pred_fallthru
    _
  // Predicated region
  $region18: #{mvconv_forward.1} parent=0 // pred_check
    _
  $region19: #{mvconv_forward.1} parent=0 // pred_check_branch
    %739 = sbr.rel (0) target = $region21
  $region20: #{mvconv_forward.1} parent=0 // pred_region
    _
  $region21: #{mvconv_forward.1} parent=0 // pred_fallthru
    _

</llo_original>
